<compile_context>
chip_gen: v6e
topology: v6e:2x2x1
jax: 0.10.0
libtpu: 0.0.40
codegen_flags: <defaults>
</compile_context>

<pallas_src>
import jax
import jax.numpy as jnp
from jax.experimental import pallas as pl
from jax.experimental.pallas import tpu as pltpu

LANES = 128                      # last block dim: multiple of the 128-lane vreg width
MAX_TILE_ROWS = 4096             # (4096, 128) f32 block = 2 MiB -> ~8 MiB in flight
VMEM_LIMIT_BYTES = 32 * 1024 * 1024


def _round_up(x, m):
    return ((x + m - 1) // m) * m


def _logreg_kernel(w_ref, b_ref, x_ref, o_ref):
    # w_ref/b_ref: (1, 1) scalars in SMEM.  x_ref/o_ref: (tile_rows, 128) VMEM tiles.
    w = w_ref[0, 0]
    b = b_ref[0, 0]
    z = x_ref[...].astype(jnp.float32) * w + b        # affine on the VPU
    # sigmoid(z) = 0.5 * (1 + tanh(z / 2)): single EUP op, stable as |z| -> inf.
    o_ref[...] = 0.5 * jnp.tanh(0.5 * z) + 0.5


def _build_call(padded_rows, tile_rows, semantics, allow_fusion):
    params = dict(
        dimension_semantics=(semantics,),
        vmem_limit_bytes=VMEM_LIMIT_BYTES,
    )
    if allow_fusion:
        # Let XLA fuse the (tiny) pad/reshape producer of x straight into the
        # pallas input DMA instead of materializing a padded copy in HBM.
        params["allow_input_fusion"] = [False, False, True]   # (w, b, x)
    return pl.pallas_call(
        _logreg_kernel,
        out_shape=jax.ShapeDtypeStruct((padded_rows, LANES), jnp.float32),
        grid=(pl.cdiv(padded_rows, tile_rows),),
        in_specs=[
            pl.BlockSpec(memory_space=pltpu.SMEM),                # weight scalar
            pl.BlockSpec(memory_space=pltpu.SMEM),                # bias scalar
            pl.BlockSpec((tile_rows, LANES), lambda i: (i, 0)),   # x tile (VMEM)
        ],
        out_specs=pl.BlockSpec((tile_rows, LANES), lambda i: (i, 0)),
        compiler_params=pltpu.CompilerParams(**params),
    )


_CONFIG_CACHE = None


def _kernel_config():
    """Pick (dimension_semantics, allow_input_fusion) once by probing the backend.

    CORE_PARALLEL is what actually shards a grid axis across v7x's two
    TensorCores; "parallel" is the safe fallback for single-TC chips / older
    jax.  The probe uses an odd grid size with a partial last block (the same
    features the real call relies on) and checks numerics against a reference,
    so an unsupported combination can never leak into real calls.
    """
    global _CONFIG_CACHE
    if _CONFIG_CACHE is not None:
        return _CONFIG_CACHE

    candidates = []
    core_parallel = getattr(pltpu, "CORE_PARALLEL", None)
    if core_parallel is not None:
        candidates.append((core_parallel, True))
    candidates.append(("parallel", True))
    candidates.append(("parallel", False))     # minimal, previously-validated config

    probe_rows, probe_tile = 40, 16            # grid = 3, last block partial (8 rows)
    xp = jnp.linspace(-6.0, 6.0, probe_rows * LANES, dtype=jnp.float32)
    xp = xp.reshape(probe_rows, LANES)
    wp = jnp.full((1, 1), 0.75, jnp.float32)
    bp = jnp.full((1, 1), -0.25, jnp.float32)
    ref = jax.nn.sigmoid(xp * wp[0, 0] + bp[0, 0])

    for cfg in candidates:
        try:
            yp = _build_call(probe_rows, probe_tile, *cfg)(wp, bp, xp)
            if bool(jnp.allclose(yp, ref, atol=1e-5)):
                _CONFIG_CACHE = cfg
                return cfg
        except Exception:
            continue
    _CONFIG_CACHE = ("parallel", False)
    return _CONFIG_CACHE


def logistic_regression_forward(x, weight, bias, *, max_tile_rows=MAX_TILE_ROWS):
    """x: [N, 1] (any float dtype), weight: [1, 1], bias: [1] -> sigmoid(x W^T + b): [N, 1] f32."""
    n = x.shape[0]
    w2d = weight.reshape(1, 1).astype(jnp.float32)
    b2d = bias.reshape(1, 1).astype(jnp.float32)

    max_tile_rows = max(8, (int(max_tile_rows) // 8) * 8)

    # Lane-dense view: [N, 1] -> [rows, 128].  The reshape is layout-free; the pad
    # (only when N % 128 != 0, at most 8*128-1 elements) may fuse into the input DMA.
    rows = pl.cdiv(n, LANES)
    padded_rows = _round_up(rows, 8)             # sublane-align the slab (<= 7 extra rows)
    tile_rows = min(max_tile_rows, padded_rows)
    padded_n = padded_rows * LANES

    flat = x.reshape(-1)                         # [N, 1] -> [N]: free (same layout)
    if padded_n != n:
        flat = jnp.pad(flat, (0, padded_n - n))
    x2d = flat.reshape(padded_rows, LANES)

    semantics, allow_fusion = _kernel_config()
    out2d = _build_call(padded_rows, tile_rows, semantics, allow_fusion)(w2d, b2d, x2d)

    out = out2d.reshape(-1)
    if padded_n != n:
        out = out[:n]                            # only when padding was actually added
    return out.reshape(n, 1)


if __name__ == "__main__":
    key = jax.random.PRNGKey(0)
    k_w, k_b, k_x = jax.random.split(key, 3)

    # Deterministic parameter init mimicking nn.Linear(1, 1):
    # uniform(-1/sqrt(fan_in), 1/sqrt(fan_in)) with fan_in = 1.
    weight = jax.random.uniform(k_w, (1, 1), jnp.float32, -1.0, 1.0)
    bias = jax.random.uniform(k_b, (1,), jnp.float32, -1.0, 1.0)

    def ref(xf32):
        return jax.nn.sigmoid(xf32 @ weight.T + bias)

    # Input from the original spec: new_x = [[4.0], [6.0]].
    x = jnp.array([[4.0], [6.0]], dtype=jnp.float32)
    y = jax.block_until_ready(logistic_regression_forward(x, weight, bias))
    assert y.shape == (2, 1)
    assert jnp.allclose(y, ref(x), atol=1e-5), "mismatch vs reference (N=2)"

    # Non-lane-aligned batch: exercises the (tiny, fusable) pad path.
    x2 = jax.random.normal(k_x, (300, 1), jnp.float32)
    y2 = jax.block_until_ready(logistic_regression_forward(x2, weight, bias))
    assert jnp.allclose(y2, ref(x2), atol=1e-5), "mismatch vs reference (N=300)"

    # Lane-aligned batch: zero-copy path (no pad, no output slice).
    x3 = jax.random.normal(jax.random.PRNGKey(1), (1024, 1), jnp.float32)
    y3 = jax.block_until_ready(logistic_regression_forward(x3, weight, bias))
    assert jnp.allclose(y3, ref(x3), atol=1e-5), "mismatch vs reference (N=1024)"

    # Multi-tile grid with a partial last block (small tile override for testing).
    x4 = jax.random.normal(jax.random.PRNGKey(2), (3072, 1), jnp.float32)
    y4 = jax.block_until_ready(
        logistic_regression_forward(x4, weight, bias, max_tile_rows=16))
    assert jnp.allclose(y4, ref(x4), atol=1e-5), "mismatch vs reference (N=3072, tiled)"

    # bf16 input: loaded natively, upcast in-kernel (halves input HBM bytes).
    x5 = x3.astype(jnp.bfloat16)
    y5 = jax.block_until_ready(logistic_regression_forward(x5, weight, bias))
    assert jnp.allclose(y5, ref(x5.astype(jnp.float32)), atol=1e-5), "mismatch (bf16)"

    print("KERNEL_OK")
</pallas_src>

<mosaic_0001>
module attributes {stable_mosaic.version = 11 : i64} {
  func.func @_logreg_kernel(%arg0: i32, %arg1: memref<1x1xf32, #tpu.memory_space<smem>>, %arg2: memref<1x1xf32, #tpu.memory_space<smem>>, %arg3: memref<16x128xf32, #tpu.memory_space<vmem>>, %arg4: memref<16x128xf32, #tpu.memory_space<vmem>>) attributes {dimension_semantics = [#tpu.dimension_semantics<core_parallel>], iteration_bounds = array<i64: 3>, scalar_prefetch = 0 : i64, scratch_operands = 0 : i64, tpu.core_type = #tpu.core_type<tc>, window_params = [{transform_indices = @transform_0, window_bounds = array<i64: 1, 1>}, {transform_indices = @transform_1, window_bounds = array<i64: 1, 1>}, {transform_indices = @transform_2, window_bounds = array<i64: 16, 128>}, {transform_indices = @transform_3, window_bounds = array<i64: 16, 128>}]} {
    %c0 = arith.constant 0 : index
    %c0_0 = arith.constant 0 : index
    %0 = memref.load %arg1[%c0, %c0_0] : memref<1x1xf32, #tpu.memory_space<smem>>
    %c0_1 = arith.constant 0 : index
    %c0_2 = arith.constant 0 : index
    %1 = memref.load %arg2[%c0_1, %c0_2] : memref<1x1xf32, #tpu.memory_space<smem>>
    %c0_3 = arith.constant 0 : index
    %c0_4 = arith.constant 0 : index
    %2 = vector.load %arg3[%c0_3, %c0_4] : memref<16x128xf32, #tpu.memory_space<vmem>>, vector<16x128xf32>
    %3 = vector.broadcast %0 : f32 to vector<16x128xf32>
    %4 = arith.mulf %2, %3 : vector<16x128xf32>
    %5 = vector.broadcast %1 : f32 to vector<16x128xf32>
    %6 = arith.addf %4, %5 : vector<16x128xf32>
    %cst = arith.constant 5.000000e-01 : f32
    %7 = vector.broadcast %cst : f32 to vector<16x128xf32>
    %8 = arith.mulf %7, %6 : vector<16x128xf32>
    %9 = math.tanh %8 : vector<16x128xf32>
    %cst_5 = arith.constant 5.000000e-01 : f32
    %10 = vector.broadcast %cst_5 : f32 to vector<16x128xf32>
    %11 = arith.mulf %10, %9 : vector<16x128xf32>
    %cst_6 = arith.constant 5.000000e-01 : f32
    %12 = vector.broadcast %cst_6 : f32 to vector<16x128xf32>
    %13 = arith.addf %11, %12 : vector<16x128xf32>
    %c0_7 = arith.constant 0 : index
    %c0_8 = arith.constant 0 : index
    %14 = vector.load %arg4[%c0_7, %c0_8] : memref<16x128xf32, #tpu.memory_space<vmem>>, vector<16x128xf32>
    tpu.vector_store %arg4[%c0_7, %c0_8], %13 {strides = array<i32>} : memref<16x128xf32, #tpu.memory_space<vmem>>, vector<16x128xf32>,
    return
  }
  func.func @transform_0(%arg0: i32) -> (i32, i32) {
    %c0_i32 = arith.constant 0 : i32
    %c0_i32_0 = arith.constant 0 : i32
    %c0_i32_1 = arith.constant 0 : i32
    return %c0_i32, %c0_i32_0 : i32, i32
  }
  func.func @transform_1(%arg0: i32) -> (i32, i32) {
    %c0_i32 = arith.constant 0 : i32
    %c0_i32_0 = arith.constant 0 : i32
    %c0_i32_1 = arith.constant 0 : i32
    return %c0_i32, %c0_i32_0 : i32, i32
  }
  func.func @transform_2(%arg0: i32) -> (i32, i32) {
    %c0_i32 = arith.constant 0 : i32
    %c0_i32_0 = arith.constant 0 : i32
    return %arg0, %c0_i32 : i32, i32
  }
  func.func @transform_3(%arg0: i32) -> (i32, i32) {
    %c0_i32 = arith.constant 0 : i32
    %c0_i32_0 = arith.constant 0 : i32
    return %arg0, %c0_i32 : i32, i32
  }
}

module attributes {stable_mosaic.version = 11 : i64} {
  func.func @_logreg_kernel(%arg0: i32, %arg1: memref<1x1xf32, #tpu.memory_space<smem>>, %arg2: memref<1x1xf32, #tpu.memory_space<smem>>, %arg3: memref<16x128xf32, #tpu.memory_space<vmem>>, %arg4: memref<16x128xf32, #tpu.memory_space<vmem>>) attributes {dimension_semantics = [#tpu.dimension_semantics<parallel>], iteration_bounds = array<i64: 3>, scalar_prefetch = 0 : i64, scratch_operands = 0 : i64, tpu.core_type = #tpu.core_type<tc>, window_params = [{transform_indices = @transform_0, window_bounds = array<i64: 1, 1>}, {transform_indices = @transform_1, window_bounds = array<i64: 1, 1>}, {transform_indices = @transform_2, window_bounds = array<i64: 16, 128>}, {transform_indices = @transform_3, window_bounds = array<i64: 16, 128>}]} {
    %c0 = arith.constant 0 : index
    %c0_0 = arith.constant 0 : index
    %0 = memref.load %arg1[%c0, %c0_0] : memref<1x1xf32, #tpu.memory_space<smem>>
    %c0_1 = arith.constant 0 : index
    %c0_2 = arith.constant 0 : index
    %1 = memref.load %arg2[%c0_1, %c0_2] : memref<1x1xf32, #tpu.memory_space<smem>>
    %c0_3 = arith.constant 0 : index
    %c0_4 = arith.constant 0 : index
    %2 = vector.load %arg3[%c0_3, %c0_4] : memref<16x128xf32, #tpu.memory_space<vmem>>, vector<16x128xf32>
    %3 = vector.broadcast %0 : f32 to vector<16x128xf32>
    %4 = arith.mulf %2, %3 : vector<16x128xf32>
    %5 = vector.broadcast %1 : f32 to vector<16x128xf32>
    %6 = arith.addf %4, %5 : vector<16x128xf32>
    %cst = arith.constant 5.000000e-01 : f32
    %7 = vector.broadcast %cst : f32 to vector<16x128xf32>
    %8 = arith.mulf %7, %6 : vector<16x128xf32>
    %9 = math.tanh %8 : vector<16x128xf32>
    %cst_5 = arith.constant 5.000000e-01 : f32
    %10 = vector.broadcast %cst_5 : f32 to vector<16x128xf32>
    %11 = arith.mulf %10, %9 : vector<16x128xf32>
    %cst_6 = arith.constant 5.000000e-01 : f32
    %12 = vector.broadcast %cst_6 : f32 to vector<16x128xf32>
    %13 = arith.addf %11, %12 : vector<16x128xf32>
    %c0_7 = arith.constant 0 : index
    %c0_8 = arith.constant 0 : index
    %14 = vector.load %arg4[%c0_7, %c0_8] : memref<16x128xf32, #tpu.memory_space<vmem>>, vector<16x128xf32>
    tpu.vector_store %arg4[%c0_7, %c0_8], %13 {strides = array<i32>} : memref<16x128xf32, #tpu.memory_space<vmem>>, vector<16x128xf32>,
    return
  }
  func.func @transform_0(%arg0: i32) -> (i32, i32) {
    %c0_i32 = arith.constant 0 : i32
    %c0_i32_0 = arith.constant 0 : i32
    %c0_i32_1 = arith.constant 0 : i32
    return %c0_i32, %c0_i32_0 : i32, i32
  }
  func.func @transform_1(%arg0: i32) -> (i32, i32) {
    %c0_i32 = arith.constant 0 : i32
    %c0_i32_0 = arith.constant 0 : i32
    %c0_i32_1 = arith.constant 0 : i32
    return %c0_i32, %c0_i32_0 : i32, i32
  }
  func.func @transform_2(%arg0: i32) -> (i32, i32) {
    %c0_i32 = arith.constant 0 : i32
    %c0_i32_0 = arith.constant 0 : i32
    return %arg0, %c0_i32 : i32, i32
  }
  func.func @transform_3(%arg0: i32) -> (i32, i32) {
    %c0_i32 = arith.constant 0 : i32
    %c0_i32_0 = arith.constant 0 : i32
    return %arg0, %c0_i32 : i32, i32
  }
}

module attributes {stable_mosaic.version = 11 : i64} {
  func.func @_logreg_kernel(%arg0: i32, %arg1: memref<1x1xf32, #tpu.memory_space<smem>>, %arg2: memref<1x1xf32, #tpu.memory_space<smem>>, %arg3: memref<16x128xf32, #tpu.memory_space<vmem>>, %arg4: memref<16x128xf32, #tpu.memory_space<vmem>>) attributes {dimension_semantics = [#tpu.dimension_semantics<parallel>], iteration_bounds = array<i64: 3>, scalar_prefetch = 0 : i64, scratch_operands = 0 : i64, tpu.core_type = #tpu.core_type<tc>, window_params = [{transform_indices = @transform_0, window_bounds = array<i64: 1, 1>}, {transform_indices = @transform_1, window_bounds = array<i64: 1, 1>}, {transform_indices = @transform_2, window_bounds = array<i64: 16, 128>}, {transform_indices = @transform_3, window_bounds = array<i64: 16, 128>}]} {
    %c0 = arith.constant 0 : index
    %c0_0 = arith.constant 0 : index
    %0 = memref.load %arg1[%c0, %c0_0] : memref<1x1xf32, #tpu.memory_space<smem>>
    %c0_1 = arith.constant 0 : index
    %c0_2 = arith.constant 0 : index
    %1 = memref.load %arg2[%c0_1, %c0_2] : memref<1x1xf32, #tpu.memory_space<smem>>
    %c0_3 = arith.constant 0 : index
    %c0_4 = arith.constant 0 : index
    %2 = vector.load %arg3[%c0_3, %c0_4] : memref<16x128xf32, #tpu.memory_space<vmem>>, vector<16x128xf32>
    %3 = vector.broadcast %0 : f32 to vector<16x128xf32>
    %4 = arith.mulf %2, %3 : vector<16x128xf32>
    %5 = vector.broadcast %1 : f32 to vector<16x128xf32>
    %6 = arith.addf %4, %5 : vector<16x128xf32>
    %cst = arith.constant 5.000000e-01 : f32
    %7 = vector.broadcast %cst : f32 to vector<16x128xf32>
    %8 = arith.mulf %7, %6 : vector<16x128xf32>
    %9 = math.tanh %8 : vector<16x128xf32>
    %cst_5 = arith.constant 5.000000e-01 : f32
    %10 = vector.broadcast %cst_5 : f32 to vector<16x128xf32>
    %11 = arith.mulf %10, %9 : vector<16x128xf32>
    %cst_6 = arith.constant 5.000000e-01 : f32
    %12 = vector.broadcast %cst_6 : f32 to vector<16x128xf32>
    %13 = arith.addf %11, %12 : vector<16x128xf32>
    %c0_7 = arith.constant 0 : index
    %c0_8 = arith.constant 0 : index
    %14 = vector.load %arg4[%c0_7, %c0_8] : memref<16x128xf32, #tpu.memory_space<vmem>>, vector<16x128xf32>
    tpu.vector_store %arg4[%c0_7, %c0_8], %13 {strides = array<i32>} : memref<16x128xf32, #tpu.memory_space<vmem>>, vector<16x128xf32>,
    return
  }
  func.func @transform_0(%arg0: i32) -> (i32, i32) {
    %c0_i32 = arith.constant 0 : i32
    %c0_i32_0 = arith.constant 0 : i32
    %c0_i32_1 = arith.constant 0 : i32
    return %c0_i32, %c0_i32_0 : i32, i32
  }
  func.func @transform_1(%arg0: i32) -> (i32, i32) {
    %c0_i32 = arith.constant 0 : i32
    %c0_i32_0 = arith.constant 0 : i32
    %c0_i32_1 = arith.constant 0 : i32
    return %c0_i32, %c0_i32_0 : i32, i32
  }
  func.func @transform_2(%arg0: i32) -> (i32, i32) {
    %c0_i32 = arith.constant 0 : i32
    %c0_i32_0 = arith.constant 0 : i32
    return %arg0, %c0_i32 : i32, i32
  }
  func.func @transform_3(%arg0: i32) -> (i32, i32) {
    %c0_i32 = arith.constant 0 : i32
    %c0_i32_0 = arith.constant 0 : i32
    return %arg0, %c0_i32 : i32, i32
  }
}

module attributes {stable_mosaic.version = 11 : i64} {
  func.func @_logreg_kernel(%arg0: i32, %arg1: memref<1x1xf32, #tpu.memory_space<smem>>, %arg2: memref<1x1xf32, #tpu.memory_space<smem>>, %arg3: memref<8x128xf32, #tpu.memory_space<vmem>>, %arg4: memref<8x128xf32, #tpu.memory_space<vmem>>) attributes {dimension_semantics = [#tpu.dimension_semantics<parallel>], iteration_bounds = array<i64: 1>, scalar_prefetch = 0 : i64, scratch_operands = 0 : i64, tpu.core_type = #tpu.core_type<tc>, window_params = [{transform_indices = @transform_0, window_bounds = array<i64: 1, 1>}, {transform_indices = @transform_1, window_bounds = array<i64: 1, 1>}, {transform_indices = @transform_2, window_bounds = array<i64: 8, 128>}, {transform_indices = @transform_3, window_bounds = array<i64: 8, 128>}]} {
    %c0 = arith.constant 0 : index
    %c0_0 = arith.constant 0 : index
    %0 = memref.load %arg1[%c0, %c0_0] : memref<1x1xf32, #tpu.memory_space<smem>>
    %c0_1 = arith.constant 0 : index
    %c0_2 = arith.constant 0 : index
    %1 = memref.load %arg2[%c0_1, %c0_2] : memref<1x1xf32, #tpu.memory_space<smem>>
    %c0_3 = arith.constant 0 : index
    %c0_4 = arith.constant 0 : index
    %2 = vector.load %arg3[%c0_3, %c0_4] : memref<8x128xf32, #tpu.memory_space<vmem>>, vector<8x128xf32>
    %3 = vector.broadcast %0 : f32 to vector<8x128xf32>
    %4 = arith.mulf %2, %3 : vector<8x128xf32>
    %5 = vector.broadcast %1 : f32 to vector<8x128xf32>
    %6 = arith.addf %4, %5 : vector<8x128xf32>
    %cst = arith.constant 5.000000e-01 : f32
    %7 = vector.broadcast %cst : f32 to vector<8x128xf32>
    %8 = arith.mulf %7, %6 : vector<8x128xf32>
    %9 = math.tanh %8 : vector<8x128xf32>
    %cst_5 = arith.constant 5.000000e-01 : f32
    %10 = vector.broadcast %cst_5 : f32 to vector<8x128xf32>
    %11 = arith.mulf %10, %9 : vector<8x128xf32>
    %cst_6 = arith.constant 5.000000e-01 : f32
    %12 = vector.broadcast %cst_6 : f32 to vector<8x128xf32>
    %13 = arith.addf %11, %12 : vector<8x128xf32>
    %c0_7 = arith.constant 0 : index
    %c0_8 = arith.constant 0 : index
    %14 = vector.load %arg4[%c0_7, %c0_8] : memref<8x128xf32, #tpu.memory_space<vmem>>, vector<8x128xf32>
    tpu.vector_store %arg4[%c0_7, %c0_8], %13 {strides = array<i32>} : memref<8x128xf32, #tpu.memory_space<vmem>>, vector<8x128xf32>,
    return
  }
  func.func @transform_0(%arg0: i32) -> (i32, i32) {
    %c0_i32 = arith.constant 0 : i32
    %c0_i32_0 = arith.constant 0 : i32
    %c0_i32_1 = arith.constant 0 : i32
    return %c0_i32, %c0_i32_0 : i32, i32
  }
  func.func @transform_1(%arg0: i32) -> (i32, i32) {
    %c0_i32 = arith.constant 0 : i32
    %c0_i32_0 = arith.constant 0 : i32
    %c0_i32_1 = arith.constant 0 : i32
    return %c0_i32, %c0_i32_0 : i32, i32
  }
  func.func @transform_2(%arg0: i32) -> (i32, i32) {
    %c0_i32 = arith.constant 0 : i32
    %c0_i32_0 = arith.constant 0 : i32
    return %arg0, %c0_i32 : i32, i32
  }
  func.func @transform_3(%arg0: i32) -> (i32, i32) {
    %c0_i32 = arith.constant 0 : i32
    %c0_i32_0 = arith.constant 0 : i32
    return %arg0, %c0_i32 : i32, i32
  }
}

</mosaic_0001>

<llo_original>
// kernel: tpu_custom_call.1
$region0: #{tpu_custom_call.1}
  #allocation0 [shape = 'u32[]', space=smem, size = 0x4, offset = 0x4, fixed_abs, tag = 'smem constant byte address 0x4 - core index']
  #allocation1 [shape = 'u32[144,128]{1,0:T(1,128)}', space=vmem, size = 0x12000, scoped, tag = 'internal scratch']
  #allocation2 [shape = 'f32[1,1]{1,0:T(1,128)S(6)}', space=smem, size = 0x200, scoped, tag = 'scoped memory for tpu_custom_call.1']
  #allocation3 [shape = 'f32[1,1]{1,0:T(1,128)S(6)}', space=smem, size = 0x200, scoped, tag = 'scoped memory for tpu_custom_call.1']
  %s0 = inlined_call_operand.<no memory space> [shape: f32[1,1], index: 0, kind: input, shape index: {}]
  %s1 = inlined_call_operand.<no memory space> [shape: f32[1,1], index: 1, kind: input, shape index: {}]
  %s2 = inlined_call_operand.hbm [shape: f32[40,128], index: 2, kind: input, shape index: {}]
  %s3 = inlined_call_operand.hbm [shape: f32[40,128], index: 3, kind: output, shape index: {}]
  %s4 = sld [smem:[#allocation0]]
  $region49: #{tpu_custom_call.1} parent=0
    _
  %s6 = ssub.s32 1, %s4
  %s7 = scalar_select 0, %s6, %s4
  %8 = sst [smem:[#allocation2]] %s0
  %9 = sst [smem:[#allocation3]] %s1
  $region1: #{tpu_custom_call.1} parent=0
    #allocation4 [shape = 'u8[16384]{0}', space=vmem, size = 0x4000, scoped, tag = 'input window, operand 2']
    #allocation5 [shape = 's32[2]{0}', space=sflag, size = 0x8, scoped, tag = 'scoped memory for tpu_custom_call.1']
    #allocation6 [shape = 's32[2]{0}', space=sflag, size = 0x8, scoped, tag = 'scoped memory for tpu_custom_call.1']
    #allocation7 [shape = 'u8[16384]{0}', space=vmem, size = 0x4000, scoped, tag = 'output window, operand 0']
    %10 = vsyncpa [#allocation5], 0
    %s11 = scalar_lea.sflag [#allocation5], 1
    %12 = vsyncpa %s11, 0
    %13 = vsyncpa [#allocation6], 0
    %s14 = scalar_lea.sflag [#allocation6], 1
    %15 = vsyncpa %s14, 0
    loop: start=0, step=1, limit=5
    $region2: #{tpu_custom_call.1} parent=1 // loop_pre_header
      _
    $region3: #{tpu_custom_call.1} parent=1 // loop_header
      %s17 = sphi 0, %s21
      %p18 = scmp.ge.s32.totalorder %s17, 5
      %s25 = sphi 0, %s25
      %s27 = sphi 0, %s25
      %s28 = sphi 0, %s27
      %s42 = sphi 0, %s28
      %s46 = sphi 0, %s46
      %s48 = sphi 0, %s46
      %s49 = sphi 0, %s48
      %s63 = sphi 0, %s49
      %s69 = sphi 0, %s71
      %s72 = sphi 0, %s69
      %s73 = sphi 0, %s72
      %s89 = sphi 0, %s73
      %s95 = sphi 0, %s97
      %s98 = sphi 0, %s95
      %s99 = sphi 0, %s98
      %s115 = sphi 0, %s99
    $region4: #{tpu_custom_call.1} parent=1 // loop_header_branch
      %20 = sbr.rel (%p18) target = $region8
    $region5: #{tpu_custom_call.1} parent=1 // loop_body
      %s22 = ssub.s32 %s17, 1
      %s23 = ssub.s32 %s17, 2
      %s24 = sadd.s32 %s17, 1
      %s26 = sadd.s32 %s25, 1
      %p29 = scmp.eq.s32.totalorder %s17, 2
      %p30 = scmp.ne.s32.totalorder %s25, %s27
      %p31 = scmp.eq.s32.totalorder %s17, 0
      %p32 = por %p30, %p31
      %p33 = scmp.ne.s32.totalorder %s25, %s27
      %p34 = scmp.eq.s32.totalorder %s22, 2
      %p35 = por %p33, %p34
      %p36 = scmp.ne.s32.totalorder %s27, %s28
      %p37 = scmp.eq.s32.totalorder %s22, 0
      %p38 = por %p36, %p37
      %p39 = scmp.ne.s32.totalorder %s27, %s28
      %p40 = scmp.eq.s32.totalorder %s23, 2
      %p41 = por %p39, %p40
      %p43 = scmp.ne.s32.totalorder %s28, %s42
      %p44 = scmp.eq.s32.totalorder %s23, 0
      %p45 = por %p43, %p44
      %s47 = sadd.s32 %s46, 1
      %p50 = scmp.eq.s32.totalorder %s17, 2
      %p51 = scmp.ne.s32.totalorder %s46, %s48
      %p52 = scmp.eq.s32.totalorder %s17, 0
      %p53 = por %p51, %p52
      %p54 = scmp.ne.s32.totalorder %s46, %s48
      %p55 = scmp.eq.s32.totalorder %s22, 2
      %p56 = por %p54, %p55
      %p57 = scmp.ne.s32.totalorder %s48, %s49
      %p58 = scmp.eq.s32.totalorder %s22, 0
      %p59 = por %p57, %p58
      %p60 = scmp.ne.s32.totalorder %s48, %s49
      %p61 = scmp.eq.s32.totalorder %s23, 2
      %p62 = por %p60, %p61
      %p64 = scmp.ne.s32.totalorder %s49, %s63
      %p65 = scmp.eq.s32.totalorder %s23, 0
      %p66 = por %p64, %p65
      %s67 = ssub.s32 %s17, %s24
      %p68 = scmp.eq.s32.totalorder %s67, 0
      %s70 = sadd.s32 %s69, 1
      %s71 = scalar_select %p68, %s69, %s70
      %p74 = pneg %p68
      %p75 = scmp.eq.s32.totalorder %s17, 2
      %p76 = por %p74, %p75
      %p77 = scmp.ne.s32.totalorder %s69, %s72
      %p78 = scmp.eq.s32.totalorder %s17, 0
      %p79 = por %p77, %p78
      %p80 = scmp.ne.s32.totalorder %s69, %s72
      %p81 = scmp.eq.s32.totalorder %s22, 2
      %p82 = por %p80, %p81
      %p83 = scmp.ne.s32.totalorder %s72, %s73
      %p84 = scmp.eq.s32.totalorder %s22, 0
      %p85 = por %p83, %p84
      %p86 = scmp.ne.s32.totalorder %s72, %s73
      %p87 = scmp.eq.s32.totalorder %s23, 2
      %p88 = por %p86, %p87
      %p90 = scmp.ne.s32.totalorder %s73, %s89
      %p91 = scmp.eq.s32.totalorder %s23, 0
      %p92 = por %p90, %p91
      %s93 = ssub.s32 %s17, %s24
      %p94 = scmp.eq.s32.totalorder %s93, 0
      %s96 = sadd.s32 %s95, 1
      %s97 = scalar_select %p94, %s95, %s96
      %p100 = pneg %p94
      %p101 = scmp.eq.s32.totalorder %s17, 2
      %p102 = por %p100, %p101
      %p103 = scmp.ne.s32.totalorder %s95, %s98
      %p104 = scmp.eq.s32.totalorder %s17, 0
      %p105 = por %p103, %p104
      %p106 = scmp.ne.s32.totalorder %s95, %s98
      %p107 = scmp.eq.s32.totalorder %s22, 2
      %p108 = por %p106, %p107
      %p109 = scmp.ne.s32.totalorder %s98, %s99
      %p110 = scmp.eq.s32.totalorder %s22, 0
      %p111 = por %p109, %p110
      %p112 = scmp.ne.s32.totalorder %s98, %s99
      %p113 = scmp.eq.s32.totalorder %s23, 2
      %p114 = por %p112, %p113
      %p116 = scmp.ne.s32.totalorder %s99, %s115
      %p117 = scmp.eq.s32.totalorder %s23, 0
      %p118 = por %p116, %p117
      %p119 = scmp.le.s32.totalorder 1, %s17
      %p120 = scmp.lt.s32.totalorder %s17, 4
      %p121 = pnand %p119, %p120
      %p122 = pneg %p121
      // Predicated region
      $region9: #{tpu_custom_call.1} parent=5 // pred_check
        _
      $region10: #{tpu_custom_call.1} parent=5 // pred_check_branch
        %124 = sbr.rel (%p121) target = $region12
      $region11: #{tpu_custom_call.1} parent=5 // pred_region
        %s125 = ssub.s32 %s17, 1
        // Predicated region
        $region13: #{tpu_custom_call.1} parent=11 // pred_check
          %p126 = pneg %p38
        $region14: #{tpu_custom_call.1} parent=11 // pred_check_branch
          %128 = sbr.rel (%p126) target = $region16
        $region15: #{tpu_custom_call.1} parent=11 // pred_region
          _
        $region16: #{tpu_custom_call.1} parent=11 // pred_fallthru
          _
        // Predicated region
        $region17: #{tpu_custom_call.1} parent=11 // pred_check
          %p129 = pneg %p59
        $region18: #{tpu_custom_call.1} parent=11 // pred_check_branch
          %131 = sbr.rel (%p129) target = $region20
        $region19: #{tpu_custom_call.1} parent=11 // pred_region
          _
        $region20: #{tpu_custom_call.1} parent=11 // pred_fallthru
          _
      $region12: #{tpu_custom_call.1} parent=5 // pred_fallthru
        _
      %p132 = scmp.lt.s32.totalorder %s17, 3
      // Predicated region
      $region21: #{tpu_custom_call.1} parent=5 // pred_check
        %p133 = pneg %p132
      $region22: #{tpu_custom_call.1} parent=5 // pred_check_branch
        %135 = sbr.rel (%p133) target = $region24
      $region23: #{tpu_custom_call.1} parent=5 // pred_region
        // Predicated region
        $region25: #{tpu_custom_call.1} parent=23 // pred_check
          %p136 = pneg %p79
        $region26: #{tpu_custom_call.1} parent=23 // pred_check_branch
          %138 = sbr.rel (%p136) target = $region28
        $region27: #{tpu_custom_call.1} parent=23 // pred_region
          %s139 = sand.u32 %s69, 1
          %s140 = scalar_lea.sflag [#allocation5], %s139
          %s141 = sand.u32 %s69, 1
          %s142 = smul.addr %s141, 16
          %s143 = scalar_lea.vmem [#allocation4], %s142
          %s144 = smul.u32 2, %s17
          %s145 = ssub.s32 5, %s144
          %p146 = scmp.lt.s32.totalorder %s145, 2
          %s147 = scalar_select %p146, %s145, 2
          %s148 = smul.u32 128, %s147
          %s150 = ssub.s32 256, %s148
          %151 = vsyncadd %s140, %s150
          %p152 = scmp.ne.s32.totalorder 0, %s148
          %s153 = smul.addr %s144, 128
          %s154 = scalar_lea.hbm %s2, %s153
          %s155 = smul.u32 8, %s147
          %s156 = sshll.u32 %s143, 4
          %s157 = int_to_ptr.vmem [resolvable:$true] %s156
          %s158 = sshll.u32 %s155, 4
          %162 = dma.hbm_to_vmem [thread:$0]  (%p152), %s154, %s158, %s157, %s140, 128, 128, 8
        $region28: #{tpu_custom_call.1} parent=23 // pred_fallthru
          _
      $region24: #{tpu_custom_call.1} parent=5 // pred_fallthru
        _
      %p163 = scmp.le.s32.totalorder 1, %s17
      %p164 = scmp.lt.s32.totalorder %s17, 4
      %p165 = pnand %p163, %p164
      %p166 = pneg %p165
      // Predicated region
      $region29: #{tpu_custom_call.1} parent=5 // pred_check
        _
      $region30: #{tpu_custom_call.1} parent=5 // pred_check_branch
        %168 = sbr.rel (%p165) target = $region32
      $region31: #{tpu_custom_call.1} parent=5 // pred_region
        %s169 = ssub.s32 %s17, 1
        %s170 = sand.u32 %s72, 1
        %s171 = scalar_lea.sflag [#allocation5], %s170
        %s172 = sand.u32 %s72, 1
        %s173 = smul.addr %s172, 16
        %s174 = scalar_lea.vmem [#allocation4], %s173
        // Predicated region
        $region33: #{tpu_custom_call.1} parent=31 // pred_check
          %p175 = pneg %p85
        $region34: #{tpu_custom_call.1} parent=31 // pred_check_branch
          %177 = sbr.rel (%p175) target = $region36
        $region35: #{tpu_custom_call.1} parent=31 // pred_region
          %178 = dma.done %s171, 256
        $region36: #{tpu_custom_call.1} parent=31 // pred_fallthru
          _
        %p179 = pneg %p38
        %p180 = pneg %p35
        %p181 = pneg %p59
        %p182 = pneg %p56
        %s183 = sand.u32 %s72, 1
        %s184 = scalar_lea.sflag [#allocation5], %s183
        %s185 = sand.u32 %s72, 1
        %s186 = smul.addr %s185, 16
        %s187 = scalar_lea.vmem [#allocation4], %s186
        %p188 = pneg %p85
        %p189 = pneg %p82
        %p190 = pneg %p111
        %p191 = pneg %p108
        %s192 = sand.u32 %s98, 1
        %s193 = scalar_lea.sflag [#allocation6], %s192
        %s194 = sand.u32 %s98, 1
        %s195 = smul.addr %s194, 16
        %s196 = scalar_lea.vmem [#allocation7], %s195
        %s197 = smul.u32 2, %s22
        %s198 = ssub.s32 5, %s197
        %p199 = scmp.lt.s32.totalorder %s198, 2
        %s200 = scalar_select %p199, %s198, 2
        %s201 = smul.u32 128, %s200
        %s202 = smul.u32 2, %s22
        %s203 = ssub.s32 5, %s202
        %p204 = scmp.lt.s32.totalorder %s203, 2
        %s205 = scalar_select %p204, %s203, 2
        %s206 = smul.u32 128, %s205
        %s207 = sld [smem:[#allocation2]]
        %s208 = sld [smem:[#allocation3]]
        %v209 = vld [vmem:[%s174] sm:$0xff]
        %v210 = vld [vmem:[%s174 + $0x8] sm:$0xff]
        %v211 = vstv %s207
        %v212 = vmul.f32 %v209, %v211
        %v213 = vmul.f32 %v210, %v211
        %v214 = vstv %s208
        %v215 = vadd.f32 %v212, %v214
        %v216 = vadd.f32 %v213, %v214
        %v217 = vmul.f32 %v215, 0.5
        %v218 = vmul.f32 %v216, 0.5
        %v219 = vtanh.pop %v217
        %v220 = vtanh.pop %v218
        %v221 = vmul.f32 %v219, 0.5
        %v222 = vmul.f32 %v220, 0.5
        %v223 = vadd.f32 %v221, 0.5
        %v224 = vadd.f32 %v222, 0.5
        %225 = vst [vmem:[%s196] sm:$0xff] %v223
        %226 = vst [vmem:[%s196 + $0x8] sm:$0xff] %v224
        %s227 = sand.u32 %s98, 1
        %s228 = scalar_lea.sflag [#allocation6], %s227
        %s229 = sand.u32 %s98, 1
        %s230 = smul.addr %s229, 16
        %s231 = scalar_lea.vmem [#allocation7], %s230
        // Predicated region
        $region37: #{tpu_custom_call.1} parent=31 // pred_check
          %p232 = pneg %p108
        $region38: #{tpu_custom_call.1} parent=31 // pred_check_branch
          %234 = sbr.rel (%p232) target = $region40
        $region39: #{tpu_custom_call.1} parent=31 // pred_region
          %s235 = smul.u32 2, %s22
          %s236 = ssub.s32 5, %s235
          %p237 = scmp.lt.s32.totalorder %s236, 2
          %s238 = scalar_select %p237, %s236, 2
          %s239 = smul.u32 128, %s238
          %s241 = ssub.s32 256, %s239
          %242 = vsyncadd %s228, %s241
          %p243 = scmp.ne.s32.totalorder 0, %s239
          %s244 = smul.addr %s235, 128
          %s245 = scalar_lea.hbm %s3, %s244
          %s246 = smul.u32 8, %s238
          %s247 = sshll.u32 %s231, 4
          %s248 = int_to_ptr.vmem [resolvable:$true] %s247
          %s249 = sshll.u32 %s246, 4
          %253 = dma.vmem_to_hbm [thread:$0]  (%p243), %s248, %s249, %s245, %s228, 128, 128, 8
        $region40: #{tpu_custom_call.1} parent=31 // pred_fallthru
          _
      $region32: #{tpu_custom_call.1} parent=5 // pred_fallthru
        _
      %p254 = scmp.le.s32.totalorder 2, %s17
      // Predicated region
      $region41: #{tpu_custom_call.1} parent=5 // pred_check
        %p255 = pneg %p254
      $region42: #{tpu_custom_call.1} parent=5 // pred_check_branch
        %257 = sbr.rel (%p255) target = $region44
      $region43: #{tpu_custom_call.1} parent=5 // pred_region
        %s258 = ssub.s32 %s17, 2
        // Predicated region
        $region45: #{tpu_custom_call.1} parent=43 // pred_check
          %p259 = pneg %p114
        $region46: #{tpu_custom_call.1} parent=43 // pred_check_branch
          %261 = sbr.rel (%p259) target = $region48
        $region47: #{tpu_custom_call.1} parent=43 // pred_region
          %s262 = sand.u32 %s99, 1
          %s263 = scalar_lea.sflag [#allocation6], %s262
          %s264 = sand.u32 %s99, 1
          %s265 = smul.addr %s264, 16
          %s266 = scalar_lea.vmem [#allocation7], %s265
          %267 = dma.done %s263, 256
        $region48: #{tpu_custom_call.1} parent=43 // pred_fallthru
          _
      $region44: #{tpu_custom_call.1} parent=5 // pred_fallthru
        _
    $region6: #{tpu_custom_call.1} parent=1 // loop_footer
      %s21 = sadd.s32 1, %s17
    $region7: #{tpu_custom_call.1} parent=1 // loop_footer_branch
      %16 = sbr.rel target = $region3
    $region8: #{tpu_custom_call.1} parent=1 // loop_exit
      _
    %268 = vsyncpa [#allocation5], 1
    %s269 = scalar_lea.sflag [#allocation5], 1
    %270 = vsyncpa %s269, 1
    %271 = vsyncpa [#allocation6], 1
    %s272 = scalar_lea.sflag [#allocation6], 1
    %273 = vsyncpa %s272, 1

// kernel: tpu_custom_call.1
$region0: #{tpu_custom_call.1}
  #allocation0 [shape = 'u32[]', space=smem, size = 0x4, offset = 0x4, fixed_abs, tag = 'smem constant byte address 0x4 - core index']
  #allocation1 [shape = 'u32[144,128]{1,0:T(1,128)}', space=vmem, size = 0x12000, scoped, tag = 'internal scratch']
  #allocation2 [shape = 'f32[1,1]{1,0:T(1,128)S(6)}', space=smem, size = 0x200, scoped, tag = 'scoped memory for tpu_custom_call.1']
  #allocation3 [shape = 'f32[1,1]{1,0:T(1,128)S(6)}', space=smem, size = 0x200, scoped, tag = 'scoped memory for tpu_custom_call.1']
  %s0 = inlined_call_operand.<no memory space> [shape: f32[1,1], index: 0, kind: input, shape index: {}]
  %s1 = inlined_call_operand.<no memory space> [shape: f32[1,1], index: 1, kind: input, shape index: {}]
  %s2 = inlined_call_operand.hbm [shape: f32[40,128], index: 2, kind: input, shape index: {}]
  %s3 = inlined_call_operand.hbm [shape: f32[40,128], index: 3, kind: output, shape index: {}]
  %s4 = sld [smem:[#allocation0]]
  $region49: #{tpu_custom_call.1} parent=0
    _
  %s6 = ssub.s32 1, %s4
  %s7 = scalar_select 0, %s6, %s4
  %8 = sst [smem:[#allocation2]] %s0
  %9 = sst [smem:[#allocation3]] %s1
  $region1: #{tpu_custom_call.1} parent=0
    #allocation4 [shape = 'u8[16384]{0}', space=vmem, size = 0x4000, scoped, tag = 'input window, operand 2']
    #allocation5 [shape = 's32[2]{0}', space=sflag, size = 0x8, scoped, tag = 'scoped memory for tpu_custom_call.1']
    #allocation6 [shape = 's32[2]{0}', space=sflag, size = 0x8, scoped, tag = 'scoped memory for tpu_custom_call.1']
    #allocation7 [shape = 'u8[16384]{0}', space=vmem, size = 0x4000, scoped, tag = 'output window, operand 0']
    %10 = vsyncpa [#allocation5], 0
    %s11 = scalar_lea.sflag [#allocation5], 1
    %12 = vsyncpa %s11, 0
    %13 = vsyncpa [#allocation6], 0
    %s14 = scalar_lea.sflag [#allocation6], 1
    %15 = vsyncpa %s14, 0
    loop: start=0, step=1, limit=5
    $region2: #{tpu_custom_call.1} parent=1 // loop_pre_header
      _
    $region3: #{tpu_custom_call.1} parent=1 // loop_header
      %s17 = sphi 0, %s21
      %p18 = scmp.ge.s32.totalorder %s17, 5
      %s25 = sphi 0, %s25
      %s27 = sphi 0, %s25
      %s28 = sphi 0, %s27
      %s42 = sphi 0, %s28
      %s46 = sphi 0, %s46
      %s48 = sphi 0, %s46
      %s49 = sphi 0, %s48
      %s63 = sphi 0, %s49
      %s69 = sphi 0, %s71
      %s72 = sphi 0, %s69
      %s73 = sphi 0, %s72
      %s89 = sphi 0, %s73
      %s95 = sphi 0, %s97
      %s98 = sphi 0, %s95
      %s99 = sphi 0, %s98
      %s115 = sphi 0, %s99
    $region4: #{tpu_custom_call.1} parent=1 // loop_header_branch
      %20 = sbr.rel (%p18) target = $region8
    $region5: #{tpu_custom_call.1} parent=1 // loop_body
      %s22 = ssub.s32 %s17, 1
      %s23 = ssub.s32 %s17, 2
      %s24 = sadd.s32 %s17, 1
      %s26 = sadd.s32 %s25, 1
      %p29 = scmp.eq.s32.totalorder %s17, 2
      %p30 = scmp.ne.s32.totalorder %s25, %s27
      %p31 = scmp.eq.s32.totalorder %s17, 0
      %p32 = por %p30, %p31
      %p33 = scmp.ne.s32.totalorder %s25, %s27
      %p34 = scmp.eq.s32.totalorder %s22, 2
      %p35 = por %p33, %p34
      %p36 = scmp.ne.s32.totalorder %s27, %s28
      %p37 = scmp.eq.s32.totalorder %s22, 0
      %p38 = por %p36, %p37
      %p39 = scmp.ne.s32.totalorder %s27, %s28
      %p40 = scmp.eq.s32.totalorder %s23, 2
      %p41 = por %p39, %p40
      %p43 = scmp.ne.s32.totalorder %s28, %s42
      %p44 = scmp.eq.s32.totalorder %s23, 0
      %p45 = por %p43, %p44
      %s47 = sadd.s32 %s46, 1
      %p50 = scmp.eq.s32.totalorder %s17, 2
      %p51 = scmp.ne.s32.totalorder %s46, %s48
      %p52 = scmp.eq.s32.totalorder %s17, 0
      %p53 = por %p51, %p52
      %p54 = scmp.ne.s32.totalorder %s46, %s48
      %p55 = scmp.eq.s32.totalorder %s22, 2
      %p56 = por %p54, %p55
      %p57 = scmp.ne.s32.totalorder %s48, %s49
      %p58 = scmp.eq.s32.totalorder %s22, 0
      %p59 = por %p57, %p58
      %p60 = scmp.ne.s32.totalorder %s48, %s49
      %p61 = scmp.eq.s32.totalorder %s23, 2
      %p62 = por %p60, %p61
      %p64 = scmp.ne.s32.totalorder %s49, %s63
      %p65 = scmp.eq.s32.totalorder %s23, 0
      %p66 = por %p64, %p65
      %s67 = ssub.s32 %s17, %s24
      %p68 = scmp.eq.s32.totalorder %s67, 0
      %s70 = sadd.s32 %s69, 1
      %s71 = scalar_select %p68, %s69, %s70
      %p74 = pneg %p68
      %p75 = scmp.eq.s32.totalorder %s17, 2
      %p76 = por %p74, %p75
      %p77 = scmp.ne.s32.totalorder %s69, %s72
      %p78 = scmp.eq.s32.totalorder %s17, 0
      %p79 = por %p77, %p78
      %p80 = scmp.ne.s32.totalorder %s69, %s72
      %p81 = scmp.eq.s32.totalorder %s22, 2
      %p82 = por %p80, %p81
      %p83 = scmp.ne.s32.totalorder %s72, %s73
      %p84 = scmp.eq.s32.totalorder %s22, 0
      %p85 = por %p83, %p84
      %p86 = scmp.ne.s32.totalorder %s72, %s73
      %p87 = scmp.eq.s32.totalorder %s23, 2
      %p88 = por %p86, %p87
      %p90 = scmp.ne.s32.totalorder %s73, %s89
      %p91 = scmp.eq.s32.totalorder %s23, 0
      %p92 = por %p90, %p91
      %s93 = ssub.s32 %s17, %s24
      %p94 = scmp.eq.s32.totalorder %s93, 0
      %s96 = sadd.s32 %s95, 1
      %s97 = scalar_select %p94, %s95, %s96
      %p100 = pneg %p94
      %p101 = scmp.eq.s32.totalorder %s17, 2
      %p102 = por %p100, %p101
      %p103 = scmp.ne.s32.totalorder %s95, %s98
      %p104 = scmp.eq.s32.totalorder %s17, 0
      %p105 = por %p103, %p104
      %p106 = scmp.ne.s32.totalorder %s95, %s98
      %p107 = scmp.eq.s32.totalorder %s22, 2
      %p108 = por %p106, %p107
      %p109 = scmp.ne.s32.totalorder %s98, %s99
      %p110 = scmp.eq.s32.totalorder %s22, 0
      %p111 = por %p109, %p110
      %p112 = scmp.ne.s32.totalorder %s98, %s99
      %p113 = scmp.eq.s32.totalorder %s23, 2
      %p114 = por %p112, %p113
      %p116 = scmp.ne.s32.totalorder %s99, %s115
      %p117 = scmp.eq.s32.totalorder %s23, 0
      %p118 = por %p116, %p117
      %p119 = scmp.le.s32.totalorder 1, %s17
      %p120 = scmp.lt.s32.totalorder %s17, 4
      %p121 = pnand %p119, %p120
      %p122 = pneg %p121
      // Predicated region
      $region9: #{tpu_custom_call.1} parent=5 // pred_check
        _
      $region10: #{tpu_custom_call.1} parent=5 // pred_check_branch
        %124 = sbr.rel (%p121) target = $region12
      $region11: #{tpu_custom_call.1} parent=5 // pred_region
        %s125 = ssub.s32 %s17, 1
        // Predicated region
        $region13: #{tpu_custom_call.1} parent=11 // pred_check
          %p126 = pneg %p38
        $region14: #{tpu_custom_call.1} parent=11 // pred_check_branch
          %128 = sbr.rel (%p126) target = $region16
        $region15: #{tpu_custom_call.1} parent=11 // pred_region
          _
        $region16: #{tpu_custom_call.1} parent=11 // pred_fallthru
          _
        // Predicated region
        $region17: #{tpu_custom_call.1} parent=11 // pred_check
          %p129 = pneg %p59
        $region18: #{tpu_custom_call.1} parent=11 // pred_check_branch
          %131 = sbr.rel (%p129) target = $region20
        $region19: #{tpu_custom_call.1} parent=11 // pred_region
          _
        $region20: #{tpu_custom_call.1} parent=11 // pred_fallthru
          _
      $region12: #{tpu_custom_call.1} parent=5 // pred_fallthru
        _
      %p132 = scmp.lt.s32.totalorder %s17, 3
      // Predicated region
      $region21: #{tpu_custom_call.1} parent=5 // pred_check
        %p133 = pneg %p132
      $region22: #{tpu_custom_call.1} parent=5 // pred_check_branch
        %135 = sbr.rel (%p133) target = $region24
      $region23: #{tpu_custom_call.1} parent=5 // pred_region
        // Predicated region
        $region25: #{tpu_custom_call.1} parent=23 // pred_check
          %p136 = pneg %p79
        $region26: #{tpu_custom_call.1} parent=23 // pred_check_branch
          %138 = sbr.rel (%p136) target = $region28
        $region27: #{tpu_custom_call.1} parent=23 // pred_region
          %s139 = sand.u32 %s69, 1
          %s140 = scalar_lea.sflag [#allocation5], %s139
          %s141 = sand.u32 %s69, 1
          %s142 = smul.addr %s141, 16
          %s143 = scalar_lea.vmem [#allocation4], %s142
          %s144 = smul.u32 2, %s17
          %s145 = ssub.s32 5, %s144
          %p146 = scmp.lt.s32.totalorder %s145, 2
          %s147 = scalar_select %p146, %s145, 2
          %s148 = smul.u32 128, %s147
          %s150 = ssub.s32 256, %s148
          %151 = vsyncadd %s140, %s150
          %p152 = scmp.ne.s32.totalorder 0, %s148
          %s153 = smul.addr %s144, 128
          %s154 = scalar_lea.hbm %s2, %s153
          %s155 = smul.u32 8, %s147
          %s156 = sshll.u32 %s143, 4
          %s157 = int_to_ptr.vmem [resolvable:$true] %s156
          %s158 = sshll.u32 %s155, 4
          %162 = dma.hbm_to_vmem [thread:$0]  (%p152), %s154, %s158, %s157, %s140, 128, 128, 8
        $region28: #{tpu_custom_call.1} parent=23 // pred_fallthru
          _
      $region24: #{tpu_custom_call.1} parent=5 // pred_fallthru
        _
      %p163 = scmp.le.s32.totalorder 1, %s17
      %p164 = scmp.lt.s32.totalorder %s17, 4
      %p165 = pnand %p163, %p164
      %p166 = pneg %p165
      // Predicated region
      $region29: #{tpu_custom_call.1} parent=5 // pred_check
        _
      $region30: #{tpu_custom_call.1} parent=5 // pred_check_branch
        %168 = sbr.rel (%p165) target = $region32
      $region31: #{tpu_custom_call.1} parent=5 // pred_region
        %s169 = ssub.s32 %s17, 1
        %s170 = sand.u32 %s72, 1
        %s171 = scalar_lea.sflag [#allocation5], %s170
        %s172 = sand.u32 %s72, 1
        %s173 = smul.addr %s172, 16
        %s174 = scalar_lea.vmem [#allocation4], %s173
        // Predicated region
        $region33: #{tpu_custom_call.1} parent=31 // pred_check
          %p175 = pneg %p85
        $region34: #{tpu_custom_call.1} parent=31 // pred_check_branch
          %177 = sbr.rel (%p175) target = $region36
        $region35: #{tpu_custom_call.1} parent=31 // pred_region
          %178 = dma.done %s171, 256
        $region36: #{tpu_custom_call.1} parent=31 // pred_fallthru
          _
        %p179 = pneg %p38
        %p180 = pneg %p35
        %p181 = pneg %p59
        %p182 = pneg %p56
        %s183 = sand.u32 %s72, 1
        %s184 = scalar_lea.sflag [#allocation5], %s183
        %s185 = sand.u32 %s72, 1
        %s186 = smul.addr %s185, 16
        %s187 = scalar_lea.vmem [#allocation4], %s186
        %p188 = pneg %p85
        %p189 = pneg %p82
        %p190 = pneg %p111
        %p191 = pneg %p108
        %s192 = sand.u32 %s98, 1
        %s193 = scalar_lea.sflag [#allocation6], %s192
        %s194 = sand.u32 %s98, 1
        %s195 = smul.addr %s194, 16
        %s196 = scalar_lea.vmem [#allocation7], %s195
        %s197 = smul.u32 2, %s22
        %s198 = ssub.s32 5, %s197
        %p199 = scmp.lt.s32.totalorder %s198, 2
        %s200 = scalar_select %p199, %s198, 2
        %s201 = smul.u32 128, %s200
        %s202 = smul.u32 2, %s22
        %s203 = ssub.s32 5, %s202
        %p204 = scmp.lt.s32.totalorder %s203, 2
        %s205 = scalar_select %p204, %s203, 2
        %s206 = smul.u32 128, %s205
        %s207 = sld [smem:[#allocation2]]
        %s208 = sld [smem:[#allocation3]]
        %v209 = vld [vmem:[%s174] sm:$0xff]
        %v210 = vld [vmem:[%s174 + $0x8] sm:$0xff]
        %v211 = vstv %s207
        %v212 = vmul.f32 %v209, %v211
        %v213 = vmul.f32 %v210, %v211
        %v214 = vstv %s208
        %v215 = vadd.f32 %v212, %v214
        %v216 = vadd.f32 %v213, %v214
        %v217 = vmul.f32 %v215, 0.5
        %v218 = vmul.f32 %v216, 0.5
        %v219 = vtanh.pop %v217
        %v220 = vtanh.pop %v218
        %v221 = vmul.f32 %v219, 0.5
        %v222 = vmul.f32 %v220, 0.5
        %v223 = vadd.f32 %v221, 0.5
        %v224 = vadd.f32 %v222, 0.5
        %225 = vst [vmem:[%s196] sm:$0xff] %v223
        %226 = vst [vmem:[%s196 + $0x8] sm:$0xff] %v224
        %s227 = sand.u32 %s98, 1
        %s228 = scalar_lea.sflag [#allocation6], %s227
        %s229 = sand.u32 %s98, 1
        %s230 = smul.addr %s229, 16
        %s231 = scalar_lea.vmem [#allocation7], %s230
        // Predicated region
        $region37: #{tpu_custom_call.1} parent=31 // pred_check
          %p232 = pneg %p108
        $region38: #{tpu_custom_call.1} parent=31 // pred_check_branch
          %234 = sbr.rel (%p232) target = $region40
        $region39: #{tpu_custom_call.1} parent=31 // pred_region
          %s235 = smul.u32 2, %s22
          %s236 = ssub.s32 5, %s235
          %p237 = scmp.lt.s32.totalorder %s236, 2
          %s238 = scalar_select %p237, %s236, 2
          %s239 = smul.u32 128, %s238
          %s241 = ssub.s32 256, %s239
          %242 = vsyncadd %s228, %s241
          %p243 = scmp.ne.s32.totalorder 0, %s239
          %s244 = smul.addr %s235, 128
          %s245 = scalar_lea.hbm %s3, %s244
          %s246 = smul.u32 8, %s238
          %s247 = sshll.u32 %s231, 4
          %s248 = int_to_ptr.vmem [resolvable:$true] %s247
          %s249 = sshll.u32 %s246, 4
          %253 = dma.vmem_to_hbm [thread:$0]  (%p243), %s248, %s249, %s245, %s228, 128, 128, 8
        $region40: #{tpu_custom_call.1} parent=31 // pred_fallthru
          _
      $region32: #{tpu_custom_call.1} parent=5 // pred_fallthru
        _
      %p254 = scmp.le.s32.totalorder 2, %s17
      // Predicated region
      $region41: #{tpu_custom_call.1} parent=5 // pred_check
        %p255 = pneg %p254
      $region42: #{tpu_custom_call.1} parent=5 // pred_check_branch
        %257 = sbr.rel (%p255) target = $region44
      $region43: #{tpu_custom_call.1} parent=5 // pred_region
        %s258 = ssub.s32 %s17, 2
        // Predicated region
        $region45: #{tpu_custom_call.1} parent=43 // pred_check
          %p259 = pneg %p114
        $region46: #{tpu_custom_call.1} parent=43 // pred_check_branch
          %261 = sbr.rel (%p259) target = $region48
        $region47: #{tpu_custom_call.1} parent=43 // pred_region
          %s262 = sand.u32 %s99, 1
          %s263 = scalar_lea.sflag [#allocation6], %s262
          %s264 = sand.u32 %s99, 1
          %s265 = smul.addr %s264, 16
          %s266 = scalar_lea.vmem [#allocation7], %s265
          %267 = dma.done %s263, 256
        $region48: #{tpu_custom_call.1} parent=43 // pred_fallthru
          _
      $region44: #{tpu_custom_call.1} parent=5 // pred_fallthru
        _
    $region6: #{tpu_custom_call.1} parent=1 // loop_footer
      %s21 = sadd.s32 1, %s17
    $region7: #{tpu_custom_call.1} parent=1 // loop_footer_branch
      %16 = sbr.rel target = $region3
    $region8: #{tpu_custom_call.1} parent=1 // loop_exit
      _
    %268 = vsyncpa [#allocation5], 1
    %s269 = scalar_lea.sflag [#allocation5], 1
    %270 = vsyncpa %s269, 1
    %271 = vsyncpa [#allocation6], 1
    %s272 = scalar_lea.sflag [#allocation6], 1
    %273 = vsyncpa %s272, 1

// kernel: tpu_custom_call.1
$region0: #{tpu_custom_call.1}
  #allocation0 [shape = 'u32[]', space=smem, size = 0x4, offset = 0x4, fixed_abs, tag = 'smem constant byte address 0x4 - core index']
  #allocation1 [shape = 'u32[144,128]{1,0:T(1,128)}', space=vmem, size = 0x12000, scoped, tag = 'internal scratch']
  #allocation2 [shape = 'f32[1,1]{1,0:T(1,128)S(6)}', space=smem, size = 0x200, scoped, tag = 'scoped memory for tpu_custom_call.1']
  #allocation3 [shape = 'f32[1,1]{1,0:T(1,128)S(6)}', space=smem, size = 0x200, scoped, tag = 'scoped memory for tpu_custom_call.1']
  %s0 = inlined_call_operand.<no memory space> [shape: f32[1,1], index: 0, kind: input, shape index: {}]
  %s1 = inlined_call_operand.<no memory space> [shape: f32[1,1], index: 1, kind: input, shape index: {}]
  %s2 = inlined_call_operand.hbm [shape: f32[8,128], index: 2, kind: input, shape index: {}]
  %s3 = inlined_call_operand.hbm [shape: f32[8,128], index: 3, kind: output, shape index: {}]
  %s4 = sld [smem:[#allocation0]]
  $region26: #{tpu_custom_call.1} parent=0
    _
  %s6 = ssub.s32 1, %s4
  %s7 = scalar_select 0, %s6, %s4
  %8 = sst [smem:[#allocation2]] %s0
  %9 = sst [smem:[#allocation3]] %s1
  $region1: #{tpu_custom_call.1} parent=0
    #allocation4 [shape = 'u8[4096]{0}', space=vmem, size = 0x1000, scoped, tag = 'input window, operand 2, single buffered']
    #allocation5 [shape = 's32[1]{0}', space=sflag, size = 0x4, scoped, tag = 'scoped memory for tpu_custom_call.1']
    #allocation6 [shape = 's32[1]{0}', space=sflag, size = 0x4, scoped, tag = 'scoped memory for tpu_custom_call.1']
    #allocation7 [shape = 'u8[4096]{0}', space=vmem, size = 0x1000, scoped, tag = 'output window, operand 0, single buffered']
    %10 = vsyncpa [#allocation5], 0
    %11 = vsyncpa [#allocation6], 0
    // Predicated region
    $region2: #{tpu_custom_call.1} parent=1 // pred_check
      _
    $region3: #{tpu_custom_call.1} parent=1 // pred_check_branch
      %13 = sbr.rel (0) target = $region5
    $region4: #{tpu_custom_call.1} parent=1 // pred_region
      _
    $region5: #{tpu_custom_call.1} parent=1 // pred_fallthru
      _
    // Predicated region
    $region6: #{tpu_custom_call.1} parent=1 // pred_check
      _
    $region7: #{tpu_custom_call.1} parent=1 // pred_check_branch
      %15 = sbr.rel (0) target = $region9
    $region8: #{tpu_custom_call.1} parent=1 // pred_region
      _
    $region9: #{tpu_custom_call.1} parent=1 // pred_fallthru
      _
    // Predicated region
    $region10: #{tpu_custom_call.1} parent=1 // pred_check
      _
    $region11: #{tpu_custom_call.1} parent=1 // pred_check_branch
      %17 = sbr.rel (0) target = $region13
    $region12: #{tpu_custom_call.1} parent=1 // pred_region
      %s19 = ssub.s32 128, 128
      %20 = vsyncadd [#allocation5], %s19
      %s22 = sshll.u32 [#allocation4], 4
      %s23 = int_to_ptr.vmem [resolvable:$true] %s22
      %25 = dma.hbm_to_vmem [thread:$0]  %s2, 128, %s23, [#allocation5]
    $region13: #{tpu_custom_call.1} parent=1 // pred_fallthru
      _
    // Predicated region
    $region14: #{tpu_custom_call.1} parent=1 // pred_check
      _
    $region15: #{tpu_custom_call.1} parent=1 // pred_check_branch
      %27 = sbr.rel (0) target = $region17
    $region16: #{tpu_custom_call.1} parent=1 // pred_region
      %28 = dma.done [#allocation5], 128
    $region17: #{tpu_custom_call.1} parent=1 // pred_fallthru
      _
    %s29 = sld [smem:[#allocation2]]
    %s30 = sld [smem:[#allocation3]]
    %v31 = vld [vmem:[#allocation4] sm:$0xff]
    %v32 = vstv %s29
    %v33 = vmul.f32 %v31, %v32
    %v34 = vstv %s30
    %v35 = vadd.f32 %v33, %v34
    %v36 = vmul.f32 %v35, 0.5
    %v37 = vtanh.pop %v36
    %v38 = vmul.f32 %v37, 0.5
    %v39 = vadd.f32 %v38, 0.5
    %40 = vst [vmem:[#allocation7] sm:$0xff] %v39
    // Predicated region
    $region18: #{tpu_custom_call.1} parent=1 // pred_check
      _
    $region19: #{tpu_custom_call.1} parent=1 // pred_check_branch
      %42 = sbr.rel (0) target = $region21
    $region20: #{tpu_custom_call.1} parent=1 // pred_region
      %s44 = ssub.s32 128, 128
      %45 = vsyncadd [#allocation6], %s44
      %s47 = sshll.u32 [#allocation7], 4
      %s48 = int_to_ptr.vmem [resolvable:$true] %s47
      %50 = dma.vmem_to_hbm [thread:$0]  %s48, 128, %s3, [#allocation6]
    $region21: #{tpu_custom_call.1} parent=1 // pred_fallthru
      _
    // Predicated region
    $region22: #{tpu_custom_call.1} parent=1 // pred_check
      _
    $region23: #{tpu_custom_call.1} parent=1 // pred_check_branch
      %52 = sbr.rel (0) target = $region25
    $region24: #{tpu_custom_call.1} parent=1 // pred_region
      %53 = dma.done [#allocation6], 128
    $region25: #{tpu_custom_call.1} parent=1 // pred_fallthru
      _
    %54 = vsyncpa [#allocation5], 1
    %55 = vsyncpa [#allocation6], 1

</llo_original>
